<compile_context>
chip_gen: v6e
topology: v6e:2x2x1
jax: 0.10.0
libtpu: 0.0.40
codegen_flags: <defaults>
</compile_context>

<pallas_src>
import functools

import jax
import jax.numpy as jnp
from jax.experimental import pallas as pl
from jax.experimental.pallas import tpu as pltpu


# ---------------------------------------------------------------------------
# Kernels.  One (tm, N) output tile per grid step; K and N are full-width so
# there is no reduction axis and no accumulator scratch.
# ---------------------------------------------------------------------------
def _mm_kernel(a_ref, b_ref, o_ref):
    # agg: filter_slab @ x           (bf16 stream, f32 MXU accumulate)
    o_ref[...] = jnp.dot(
        a_ref[...], b_ref[...], preferred_element_type=jnp.float32
    ).astype(o_ref.dtype)


def _mm_int8_kernel(q_ref, s_ref, b_ref, o_ref):
    # agg with int8 filter stream: dequant (per-row scale) in-kernel -> bf16 dot.
    a = (q_ref[...].astype(jnp.float32) * s_ref[...]).astype(jnp.bfloat16)
    o_ref[...] = jnp.dot(
        a, b_ref[...], preferred_element_type=jnp.float32
    ).astype(o_ref.dtype)


def _fc_kernel(x_ref, wt_ref, bias_ref, o_ref, *, l2_norm):
    # fc: x @ W.T + b   (+ fused L2 row-normalize)
    acc = jnp.dot(x_ref[...], wt_ref[...], preferred_element_type=jnp.float32)
    acc = acc + bias_ref[...].astype(jnp.float32)
    if l2_norm:
        denom = jnp.maximum(
            jnp.sqrt(jnp.sum(acc * acc, axis=-1, keepdims=True)), 1e-12
        )
        acc = acc / denom
    o_ref[...] = acc.astype(o_ref.dtype)


def _horner_kernel(a_ref, x_ref, b_ref, o32_ref, o16_ref, *, alpha):
    # One Horner hop: out = alpha * (A_slab @ state) + x ; also emit bf16 copy
    # so the next hop never does an XLA-level cast round-trip.
    acc = jnp.dot(a_ref[...], b_ref[...], preferred_element_type=jnp.float32)
    acc = alpha * acc + x_ref[...].astype(jnp.float32)
    o32_ref[...] = acc
    o16_ref[...] = acc.astype(jnp.bfloat16)


def _agg_fc_kernel(a_ref, xb_ref, wt_ref, bias_ref, o_ref, *, l2_norm):
    # Fused forward(agg(x)): (A_slab @ x) @ W.T + b, x / W.T / b VMEM-resident.
    h = jnp.dot(a_ref[...], xb_ref[...], preferred_element_type=jnp.float32)
    acc = jnp.dot(
        h.astype(jnp.bfloat16), wt_ref[...], preferred_element_type=jnp.float32
    )
    acc = acc + bias_ref[...].astype(jnp.float32)
    if l2_norm:
        denom = jnp.maximum(
            jnp.sqrt(jnp.sum(acc * acc, axis=-1, keepdims=True)), 1e-12
        )
        acc = acc / denom
    o_ref[...] = acc.astype(o_ref.dtype)


# ---------------------------------------------------------------------------
# Tile-size / VMEM-budget helpers (trace-time; shapes are static).
# ---------------------------------------------------------------------------
def _round_up(v, m):
    return ((v + m - 1) // m) * m


def _cdiv(a, b):
    return -(-a // b)


def _sublane_for(dtype):
    # Packed-sublane multiples: f32 -> 8, bf16 -> 16, int8/fp8 -> 32.
    b = jnp.dtype(dtype).itemsize
    return 8 if b >= 4 else (16 if b == 2 else 32)


def _vmem_budget_bytes():
    cap = 64 * 1024 * 1024  # conservative default
    try:
        cap = int(pltpu.get_tpu_info().vmem_capacity_bytes)
    except Exception:
        pass
    try:
        kind = jax.devices()[0].device_kind.lower()
        if "v7" in kind:
            # v7x VMEM is 64 MiB per TensorCore; the reported value may be per chip.
            cap = min(cap, 64 * 1024 * 1024)
    except Exception:
        pass
    return (cap * 3) // 4  # headroom for compiler-internal scratch


def _choose_tm(M, per_row_bytes, resident_bytes, budget, sublane):
    """Largest row tile (multiple of `sublane`) whose footprint fits VMEM.

    Streamed slabs + output tiles are counted 2x (double-buffered); resident
    operands (constant block index, DMA'd once) 1x.  Keeps >= 4 grid steps so
    both v7x TensorCores get >= 2 steps each (DMA/compute overlap preserved).
    """
    m_cover = _round_up(max(M, sublane), sublane)

    def fits(t):
        return 2 * t * per_row_bytes + resident_bytes <= budget

    tm = 2048  # 128-MiB parts (v5e/v6e) can hold large slabs; fewer steps = less overhead
    while tm > sublane and not fits(tm):
        tm //= 2
    tm = min(tm, m_cover)
    # TODO(synk): K-split (accumulator) fallback if even a sublane-row tile with
    # full K exceeds the VMEM budget.
    while m_cover // sublane >= 4 and _cdiv(M, tm) < 4 and tm > sublane:
        tm = max(sublane, ((tm // 2) // sublane) * sublane)
    return max(tm, sublane)


# ---------------------------------------------------------------------------
# Generic row-tiled launcher: row-streamed 2-D inputs + small VMEM-resident
# 2-D inputs -> row-tiled 2-D outputs.  Ragged M handled by partial blocks
# (grid = cdiv(M, tm)); out-of-bounds output rows are dropped on writeback.
# ---------------------------------------------------------------------------
def _launch_row_tiled(kernel, row_arrays, resident_arrays, out_info, *, flops):
    M = row_arrays[0].shape[0]
    sublane = max(
        [_sublane_for(a.dtype) for a in row_arrays]
        + [_sublane_for(dt) for _, dt in out_info]
    )
    per_row_bytes = sum(a.shape[1] * a.dtype.itemsize for a in row_arrays) + sum(
        w * jnp.dtype(dt).itemsize for w, dt in out_info
    )
    resident_bytes = sum(int(a.size) * a.dtype.itemsize for a in resident_arrays)
    budget = _vmem_budget_bytes()
    tm = _choose_tm(M, per_row_bytes, resident_bytes, budget, sublane)
    grid = (pl.cdiv(M, tm),)

    in_specs = [
        pl.BlockSpec((tm, a.shape[1]), lambda i: (i, 0)) for a in row_arrays
    ] + [pl.BlockSpec(a.shape, lambda i: (0, 0)) for a in resident_arrays]
    out_specs = [pl.BlockSpec((tm, w), lambda i: (i, 0)) for w, _ in out_info]
    out_shape = [jax.ShapeDtypeStruct((M, w), dt) for w, dt in out_info]

    cost = pl.CostEstimate(
        flops=int(flops),
        transcendentals=0,
        bytes_accessed=int(M * per_row_bytes + resident_bytes),
    )

    single = len(out_info) == 1
    return pl.pallas_call(
        kernel,
        out_shape=out_shape[0] if single else out_shape,
        grid_spec=pltpu.PrefetchScalarGridSpec(
            num_scalar_prefetch=0,
            grid=grid,
            in_specs=in_specs,
            out_specs=out_specs[0] if single else out_specs,
        ),
        compiler_params=pltpu.CompilerParams(
            dimension_semantics=("parallel",),
            vmem_limit_bytes=int(budget),
        ),
        cost_estimate=cost,
    )(*row_arrays, *resident_arrays)


# ---------------------------------------------------------------------------
# Jitted entry points.
# ---------------------------------------------------------------------------
@jax.jit
def _agg_bf16(filt_bf16, x_bf16):
    M, K = filt_bf16.shape
    N = x_bf16.shape[1]
    return _launch_row_tiled(
        _mm_kernel, [filt_bf16], [x_bf16], [(N, jnp.float32)], flops=2 * M * K * N
    )


@jax.jit
def _agg_int8(filt_q, filt_scales, x_bf16):
    M, K = filt_q.shape
    N = x_bf16.shape[1]
    return _launch_row_tiled(
        _mm_int8_kernel,
        [filt_q, filt_scales],
        [x_bf16],
        [(N, jnp.float32)],
        flops=2 * M * K * N,
    )


@functools.partial(jax.jit, static_argnames=("l2_norm", "out_dtype"))
def _fc(x_bf16, wt_bf16, bias2d, *, l2_norm, out_dtype):
    M, K = x_bf16.shape
    N = wt_bf16.shape[1]
    kern = functools.partial(_fc_kernel, l2_norm=l2_norm)
    return _launch_row_tiled(
        kern, [x_bf16], [wt_bf16, bias2d], [(N, out_dtype)], flops=2 * M * K * N
    )


@functools.partial(jax.jit, static_argnames=("alpha",))
def _horner_step(a_bf16, x32, state_bf16, *, alpha):
    M, K = a_bf16.shape
    N = x32.shape[1]
    kern = functools.partial(_horner_kernel, alpha=alpha)
    return _launch_row_tiled(
        kern,
        [a_bf16, x32],
        [state_bf16],
        [(N, jnp.float32), (N, jnp.bfloat16)],
        flops=2 * M * K * N,
    )


@functools.partial(jax.jit, static_argnames=("l2_norm", "out_dtype"))
def _agg_fc(filt_bf16, x_bf16, wt_bf16, bias2d, *, l2_norm, out_dtype):
    M, K = filt_bf16.shape
    F = wt_bf16.shape[1]
    N_in = x_bf16.shape[1]
    kern = functools.partial(_agg_fc_kernel, l2_norm=l2_norm)
    return _launch_row_tiled(
        kern,
        [filt_bf16],
        [x_bf16, wt_bf16, bias2d],
        [(F, out_dtype)],
        flops=2 * M * K * N_in + 2 * M * N_in * F,
    )


# ---------------------------------------------------------------------------
# JAX/Pallas port of the PyTorch attr_agg module (sgc + lin branch).
# ---------------------------------------------------------------------------
class AttrAggPallas:
    def __init__(self, attr_simi_mtx, alpha, hop, emb_dim, key, hidden_dim=None,
                 norm=None, filter_dtype="bf16", fc_out_dtype=jnp.float32):
        del hidden_dim  # only used by the gcn / 'mlp' branches (not implemented)
        n = attr_simi_mtx.shape[0]
        eye = jnp.eye(n, dtype=jnp.float32)
        filt = jnp.eye(n, dtype=jnp.float32)
        for _ in range(hop):
            filt = alpha * (attr_simi_mtx @ filt) + eye

        # Keep only the compressed filter stream (no retained f32 N x N copies).
        if filter_dtype == "int8":
            scales = jnp.maximum(jnp.max(jnp.abs(filt), axis=1, keepdims=True),
                                 1e-30) / 127.0
            self.filter_q = jnp.round(filt / scales).astype(jnp.int8)
            self.filter_scales = scales.astype(jnp.float32)
            self.filter_bf16 = None
        else:
            self.filter_bf16 = filt.astype(jnp.bfloat16)
            self.filter_q = None
            self.filter_scales = None

        self.attr_simi_bf16 = attr_simi_mtx.astype(jnp.bfloat16)  # for Horner only
        self.alpha = float(alpha)
        self.hop = int(hop)
        self.norm = norm
        self.fc_out_dtype = fc_out_dtype

        # nn.Linear(emb_dim, emb_dim): W (out, in), b (out,); forward = x @ W.T + b
        k_w, k_b = jax.random.split(key)
        bound = 1.0 / (emb_dim ** 0.5)
        self.W = jax.random.uniform(k_w, (emb_dim, emb_dim), jnp.float32, -bound, bound)
        self.b = jax.random.uniform(k_b, (emb_dim,), jnp.float32, -bound, bound)
        self.Wt_bf16 = self.W.T.astype(jnp.bfloat16)
        self.b2d = self.b.reshape(1, emb_dim)

    def agg(self, x):
        """attr_filter @ x  (compressed filter stream, f32 MXU accumulate)."""
        xb = x.astype(jnp.bfloat16)
        if self.filter_q is not None:
            return _agg_int8(self.filter_q, self.filter_scales, xb)
        return _agg_bf16(self.filter_bf16, xb)

    def agg_horner(self, x):
        """Same propagation without materializing the N x N filter
        (for sparse A / prohibitive N^3 filter builds); the residual, scale and
        bf16 re-cast are fused inside the kernel."""
        x32 = x.astype(jnp.float32)
        out32, out16 = x32, x32.astype(jnp.bfloat16)
        for _ in range(self.hop):
            out32, out16 = _horner_step(self.attr_simi_bf16, x32, out16,
                                        alpha=self.alpha)
        return out32

    def agg_forward(self, x):
        """Fused forward(agg(x)): one pallas_call, no intermediate (M, F) HBM
        round-trip (bf16-filter path; int8 filter falls back to two calls)."""
        if self.filter_bf16 is None:
            return self.__call__(self.agg(x))
        return _agg_fc(self.filter_bf16, x.astype(jnp.bfloat16), self.Wt_bf16,
                       self.b2d, l2_norm=(self.norm == "l2-norm"),
                       out_dtype=self.fc_out_dtype)

    def __call__(self, x):
        """forward (sgc, lin): x = fc(x); optional L2 norm fused in-kernel."""
        return _fc(x.astype(jnp.bfloat16), self.Wt_bf16, self.b2d,
                   l2_norm=(self.norm == "l2-norm"), out_dtype=self.fc_out_dtype)


if __name__ == "__main__":
    # Small deterministic example: 128 attributes, 32-dim embeddings.
    N_ATTR, EMB_DIM, ALPHA, HOP = 128, 32, 0.5, 2

    key = jax.random.PRNGKey(0)
    k_a, k_x, k_fc = jax.random.split(key, 3)

    A = jax.random.uniform(k_a, (N_ATTR, N_ATTR), dtype=jnp.float32)
    A = 0.5 * (A + A.T) / N_ATTR                     # synthetic symmetric similarity
    x = jax.random.normal(k_x, (N_ATTR, EMB_DIM), dtype=jnp.float32)

    # f32 reference filter (built locally; the model keeps only compressed streams).
    eye = jnp.eye(N_ATTR, dtype=jnp.float32)
    filt_f32 = jnp.eye(N_ATTR, dtype=jnp.float32)
    for _ in range(HOP):
        filt_f32 = ALPHA * (A @ filt_f32) + eye

    model = AttrAggPallas(A, ALPHA, HOP, EMB_DIM, k_fc)
    x_bf = x.astype(jnp.bfloat16).astype(jnp.float32)
    wt_bf = model.Wt_bf16.astype(jnp.float32)

    # forward: fc(x)  (fused bias)
    y = jax.block_until_ready(model(x))
    y_ref = x_bf @ wt_bf + model.b
    assert y.shape == (N_ATTR, EMB_DIM)
    assert jnp.allclose(y, y_ref, atol=2e-3, rtol=2e-3)

    # forward with fused L2 row-normalize
    model_n = AttrAggPallas(A, ALPHA, HOP, EMB_DIM, k_fc, norm="l2-norm")
    yn = jax.block_until_ready(model_n(x))
    yn_ref = y_ref / jnp.maximum(jnp.linalg.norm(y_ref, axis=1, keepdims=True), 1e-12)
    assert jnp.allclose(yn, yn_ref, atol=2e-3, rtol=2e-3)

    # forward with bf16 writeback (halved store traffic)
    model_b = AttrAggPallas(A, ALPHA, HOP, EMB_DIM, k_fc, fc_out_dtype=jnp.bfloat16)
    yb = jax.block_until_ready(model_b(x)).astype(jnp.float32)
    assert jnp.allclose(yb, y_ref, atol=2e-2, rtol=2e-2)

    # agg: attr_filter @ x (bf16 filter stream)
    z = jax.block_until_ready(model.agg(x))
    z_ref = model.filter_bf16.astype(jnp.float32) @ x_bf
    assert z.shape == (N_ATTR, EMB_DIM)
    assert jnp.allclose(z, z_ref, atol=2e-3, rtol=2e-3)

    # agg: int8 filter stream with per-row scales (dequant happens in-kernel)
    model_q = AttrAggPallas(A, ALPHA, HOP, EMB_DIM, k_fc, filter_dtype="int8")
    zq = jax.block_until_ready(model_q.agg(x))
    deq = (model_q.filter_q.astype(jnp.float32) * model_q.filter_scales)
    deq = deq.astype(jnp.bfloat16).astype(jnp.float32)
    assert jnp.allclose(zq, deq @ x_bf, atol=2e-3, rtol=2e-3)

    # fused agg + fc (single pallas_call)
    yf = jax.block_until_ready(model.agg_forward(x))
    yf_ref = z_ref.astype(jnp.bfloat16).astype(jnp.float32) @ wt_bf + model.b
    assert jnp.allclose(yf, yf_ref, atol=2e-3, rtol=2e-3)

    # Horner-style propagation: matches the f32 materialized-filter result.
    zh = jax.block_until_ready(model.agg_horner(x))
    assert jnp.allclose(zh, filt_f32 @ x, atol=5e-2, rtol=5e-2)

    # Ragged M: exercises Pallas partial last row-tile (no jnp.pad round-trip).
    x_r = x[:100]
    y_r = jax.block_until_ready(model(x_r))
    y_r_ref = x_r.astype(jnp.bfloat16).astype(jnp.float32) @ wt_bf + model.b
    assert y_r.shape == (100, EMB_DIM)
    assert jnp.allclose(y_r, y_r_ref, atol=2e-3, rtol=2e-3)

    print("KERNEL_OK")
</pallas_src>

<mosaic_0001>
module attributes {stable_mosaic.version = 11 : i64} {
  func.func @_fc_kernel(%arg0: i32, %arg1: memref<32x32xbf16, #tpu.memory_space<vmem>>, %arg2: memref<32x32xbf16, #tpu.memory_space<vmem>>, %arg3: memref<1x32xf32, #tpu.memory_space<vmem>>, %arg4: memref<32x32xf32, #tpu.memory_space<vmem>>) attributes {dimension_semantics = [#tpu.dimension_semantics<parallel>], iteration_bounds = array<i64: 4>, scalar_prefetch = 0 : i64, scratch_operands = 0 : i64, tpu.core_type = #tpu.core_type<tc>, window_params = [{transform_indices = @transform_0, window_bounds = array<i64: 32, 32>}, {pipeline_mode = #tpu.pipeline_mode<synchronous>, transform_indices = @transform_1, window_bounds = array<i64: 32, 32>}, {pipeline_mode = #tpu.pipeline_mode<synchronous>, transform_indices = @transform_2, window_bounds = array<i64: 1, 32>}, {transform_indices = @transform_3, window_bounds = array<i64: 32, 32>}]} {
    %c0 = arith.constant 0 : index
    %c0_0 = arith.constant 0 : index
    %0 = vector.load %arg1[%c0, %c0_0] : memref<32x32xbf16, #tpu.memory_space<vmem>>, vector<32x32xbf16>
    %c0_1 = arith.constant 0 : index
    %c0_2 = arith.constant 0 : index
    %1 = vector.load %arg2[%c0_1, %c0_2] : memref<32x32xbf16, #tpu.memory_space<vmem>>, vector<32x32xbf16>
    %cst = arith.constant dense<0.000000e+00> : vector<32x32xf32>
    %2 = tpu.matmul %0, %1, %cst {dimension_numbers = #tpu.dot_dimension_numbers<[1], [0], [0], [1], [0, 0, 1, 1], [], []>} : vector<32x32xbf16>, vector<32x32xbf16>, vector<32x32xf32> -> vector<32x32xf32>
    %c0_3 = arith.constant 0 : index
    %c0_4 = arith.constant 0 : index
    %3 = vector.load %arg3[%c0_3, %c0_4] : memref<1x32xf32, #tpu.memory_space<vmem>>, vector<1x32xf32>
    %4 = vector.broadcast %3 : vector<1x32xf32> to vector<32x32xf32>
    %5 = arith.addf %2, %4 : vector<32x32xf32>
    %c0_5 = arith.constant 0 : index
    %c0_6 = arith.constant 0 : index
    %6 = vector.load %arg4[%c0_5, %c0_6] : memref<32x32xf32, #tpu.memory_space<vmem>>, vector<32x32xf32>
    tpu.vector_store %arg4[%c0_5, %c0_6], %5 {strides = array<i32>} : memref<32x32xf32, #tpu.memory_space<vmem>>, vector<32x32xf32>,
    return
  }
  func.func @transform_0(%arg0: i32) -> (i32, i32) {
    %c0_i32 = arith.constant 0 : i32
    %c0_i32_0 = arith.constant 0 : i32
    return %arg0, %c0_i32 : i32, i32
  }
  func.func @transform_1(%arg0: i32) -> (i32, i32) {
    %c0_i32 = arith.constant 0 : i32
    %c0_i32_0 = arith.constant 0 : i32
    %c0_i32_1 = arith.constant 0 : i32
    return %c0_i32, %c0_i32_0 : i32, i32
  }
  func.func @transform_2(%arg0: i32) -> (i32, i32) {
    %c0_i32 = arith.constant 0 : i32
    %c0_i32_0 = arith.constant 0 : i32
    %c0_i32_1 = arith.constant 0 : i32
    return %c0_i32, %c0_i32_0 : i32, i32
  }
  func.func @transform_3(%arg0: i32) -> (i32, i32) {
    %c0_i32 = arith.constant 0 : i32
    %c0_i32_0 = arith.constant 0 : i32
    return %arg0, %c0_i32 : i32, i32
  }
}

</mosaic_0001>

<llo_original>
// kernel: _fc.1
$region0: #{_fc.1}
  #allocation0 [shape = 'u32[]', space=smem, size = 0x4, offset = 0x4, fixed_abs, tag = 'smem constant byte address 0x4 - core index']
  #allocation1 [shape = 'u32[144,128]{1,0:T(1,128)}', space=vmem, size = 0x12000, scoped, tag = 'internal scratch']
  %s0 = inlined_call_operand.vmem [shape: bf16[128,32], index: 0, kind: input, shape index: {}]
  %s1 = inlined_call_operand.vmem [shape: bf16[32,32], index: 1, kind: input, shape index: {}]
  %s2 = inlined_call_operand.vmem [shape: f32[1,32], index: 2, kind: input, shape index: {}]
  %s3 = inlined_call_operand.vmem [shape: f32[128,32], index: 3, kind: output, shape index: {}]
  %s4 = sld [smem:[#allocation0]]
  $region45: #{_fc.1} parent=0
    _
  %s6 = ssub.s32 1, %s4
  %s7 = scalar_select 0, %s6, %s4
  loop: start=0, step=1, limit=6
  $region2: #{_fc.1} parent=0 // loop_pre_header
    _
  $region3: #{_fc.1} parent=0 // loop_header
    %s9 = sphi 0, %s13
    %p10 = scmp.ge.s32.totalorder %s9, 6
    %s19 = sphi 0, %s21
    %s22 = sphi 0, %s19
    %s23 = sphi 0, %s22
    %s39 = sphi 0, %s23
    %s43 = sphi 0, %s43
    %s45 = sphi 0, %s43
    %s46 = sphi 0, %s45
    %s60 = sphi 0, %s46
    %s64 = sphi 0, %s64
    %s66 = sphi 0, %s64
    %s67 = sphi 0, %s66
    %s81 = sphi 0, %s67
    %s87 = sphi 0, %s89
    %s90 = sphi 0, %s87
    %s91 = sphi 0, %s90
    %s107 = sphi 0, %s91
  $region4: #{_fc.1} parent=0 // loop_header_branch
    %12 = sbr.rel (%p10) target = $region8
  $region5: #{_fc.1} parent=0 // loop_body
    %s14 = ssub.s32 %s9, 1
    %s15 = ssub.s32 %s9, 2
    %s16 = sadd.s32 %s9, 1
    %s17 = ssub.s32 %s9, %s16
    %p18 = scmp.eq.s32.totalorder %s17, 0
    %s20 = sadd.s32 %s19, 1
    %s21 = scalar_select %p18, %s19, %s20
    %p24 = pneg %p18
    %p25 = scmp.eq.s32.totalorder %s9, 3
    %p26 = por %p24, %p25
    %p27 = scmp.ne.s32.totalorder %s19, %s22
    %p28 = scmp.eq.s32.totalorder %s9, 0
    %p29 = por %p27, %p28
    %p30 = scmp.ne.s32.totalorder %s19, %s22
    %p31 = scmp.eq.s32.totalorder %s14, 3
    %p32 = por %p30, %p31
    %p33 = scmp.ne.s32.totalorder %s22, %s23
    %p34 = scmp.eq.s32.totalorder %s14, 0
    %p35 = por %p33, %p34
    %p36 = scmp.ne.s32.totalorder %s22, %s23
    %p37 = scmp.eq.s32.totalorder %s15, 3
    %p38 = por %p36, %p37
    %p40 = scmp.ne.s32.totalorder %s23, %s39
    %p41 = scmp.eq.s32.totalorder %s15, 0
    %p42 = por %p40, %p41
    %s44 = sadd.s32 %s43, 1
    %p47 = scmp.eq.s32.totalorder %s9, 3
    %p48 = scmp.ne.s32.totalorder %s43, %s45
    %p49 = scmp.eq.s32.totalorder %s9, 0
    %p50 = por %p48, %p49
    %p51 = scmp.ne.s32.totalorder %s43, %s45
    %p52 = scmp.eq.s32.totalorder %s14, 3
    %p53 = por %p51, %p52
    %p54 = scmp.ne.s32.totalorder %s45, %s46
    %p55 = scmp.eq.s32.totalorder %s14, 0
    %p56 = por %p54, %p55
    %p57 = scmp.ne.s32.totalorder %s45, %s46
    %p58 = scmp.eq.s32.totalorder %s15, 3
    %p59 = por %p57, %p58
    %p61 = scmp.ne.s32.totalorder %s46, %s60
    %p62 = scmp.eq.s32.totalorder %s15, 0
    %p63 = por %p61, %p62
    %s65 = sadd.s32 %s64, 1
    %p68 = scmp.eq.s32.totalorder %s9, 3
    %p69 = scmp.ne.s32.totalorder %s64, %s66
    %p70 = scmp.eq.s32.totalorder %s9, 0
    %p71 = por %p69, %p70
    %p72 = scmp.ne.s32.totalorder %s64, %s66
    %p73 = scmp.eq.s32.totalorder %s14, 3
    %p74 = por %p72, %p73
    %p75 = scmp.ne.s32.totalorder %s66, %s67
    %p76 = scmp.eq.s32.totalorder %s14, 0
    %p77 = por %p75, %p76
    %p78 = scmp.ne.s32.totalorder %s66, %s67
    %p79 = scmp.eq.s32.totalorder %s15, 3
    %p80 = por %p78, %p79
    %p82 = scmp.ne.s32.totalorder %s67, %s81
    %p83 = scmp.eq.s32.totalorder %s15, 0
    %p84 = por %p82, %p83
    %s85 = ssub.s32 %s9, %s16
    %p86 = scmp.eq.s32.totalorder %s85, 0
    %s88 = sadd.s32 %s87, 1
    %s89 = scalar_select %p86, %s87, %s88
    %p92 = pneg %p86
    %p93 = scmp.eq.s32.totalorder %s9, 3
    %p94 = por %p92, %p93
    %p95 = scmp.ne.s32.totalorder %s87, %s90
    %p96 = scmp.eq.s32.totalorder %s9, 0
    %p97 = por %p95, %p96
    %p98 = scmp.ne.s32.totalorder %s87, %s90
    %p99 = scmp.eq.s32.totalorder %s14, 3
    %p100 = por %p98, %p99
    %p101 = scmp.ne.s32.totalorder %s90, %s91
    %p102 = scmp.eq.s32.totalorder %s14, 0
    %p103 = por %p101, %p102
    %p104 = scmp.ne.s32.totalorder %s90, %s91
    %p105 = scmp.eq.s32.totalorder %s15, 3
    %p106 = por %p104, %p105
    %p108 = scmp.ne.s32.totalorder %s91, %s107
    %p109 = scmp.eq.s32.totalorder %s15, 0
    %p110 = por %p108, %p109
    %p111 = scmp.le.s32.totalorder 1, %s9
    %p112 = scmp.lt.s32.totalorder %s9, 5
    %p113 = pnand %p111, %p112
    %p114 = pneg %p113
    // Predicated region
    $region9: #{_fc.1} parent=5 // pred_check
      _
    $region10: #{_fc.1} parent=5 // pred_check_branch
      %116 = sbr.rel (%p113) target = $region12
    $region11: #{_fc.1} parent=5 // pred_region
      %s117 = ssub.s32 %s9, 1
      // Predicated region
      $region13: #{_fc.1} parent=11 // pred_check
        %p118 = pneg %p56
      $region14: #{_fc.1} parent=11 // pred_check_branch
        %120 = sbr.rel (%p118) target = $region16
      $region15: #{_fc.1} parent=11 // pred_region
        _
      $region16: #{_fc.1} parent=11 // pred_fallthru
        _
      // Predicated region
      $region17: #{_fc.1} parent=11 // pred_check
        %p121 = pneg %p77
      $region18: #{_fc.1} parent=11 // pred_check_branch
        %123 = sbr.rel (%p121) target = $region20
      $region19: #{_fc.1} parent=11 // pred_region
        _
      $region20: #{_fc.1} parent=11 // pred_fallthru
        _
    $region12: #{_fc.1} parent=5 // pred_fallthru
      _
    %p124 = scmp.lt.s32.totalorder %s9, 4
    // Predicated region
    $region21: #{_fc.1} parent=5 // pred_check
      %p125 = pneg %p124
    $region22: #{_fc.1} parent=5 // pred_check_branch
      %127 = sbr.rel (%p125) target = $region24
    $region23: #{_fc.1} parent=5 // pred_region
      // Predicated region
      $region25: #{_fc.1} parent=23 // pred_check
        %p128 = pneg %p29
      $region26: #{_fc.1} parent=23 // pred_check_branch
        %130 = sbr.rel (%p128) target = $region28
      $region27: #{_fc.1} parent=23 // pred_region
        %s131 = smul.u32 4, %s9
        %p132 = scmp.lt.s32.totalorder %s131, 15
        %s133 = scalar_select %p132, %s131, 15
        %s134 = smul.addr %s133, 4
        %s135 = scalar_lea.vmem %s0, %s134
        %s136 = smul.u32 4, %s9
      $region28: #{_fc.1} parent=23 // pred_fallthru
        _
    $region24: #{_fc.1} parent=5 // pred_fallthru
      _
    %p137 = scmp.le.s32.totalorder 1, %s9
    %p138 = scmp.lt.s32.totalorder %s9, 5
    %p139 = pnand %p137, %p138
    %p140 = pneg %p139
    // Predicated region
    $region29: #{_fc.1} parent=5 // pred_check
      _
    $region30: #{_fc.1} parent=5 // pred_check_branch
      %142 = sbr.rel (%p139) target = $region32
    $region31: #{_fc.1} parent=5 // pred_region
      %s143 = ssub.s32 %s9, 1
      %s144 = smul.u32 4, %s14
      %p145 = scmp.lt.s32.totalorder %s144, 15
      %s146 = scalar_select %p145, %s144, 15
      %s147 = smul.addr %s146, 4
      %s148 = scalar_lea.vmem %s0, %s147
      %p149 = pneg %p35
      %p150 = pneg %p32
      %p151 = pneg %p56
      %p152 = pneg %p53
      %p153 = pneg %p77
      %p154 = pneg %p74
      %p155 = pneg %p103
      %p156 = pneg %p100
      %s157 = smul.u32 4, %s14
      %p158 = scmp.lt.s32.totalorder %s157, 15
      %s159 = scalar_select %p158, %s157, 15
      %s160 = smul.addr %s159, 8
      %s161 = scalar_lea.vmem %s3, %s160
      %s162 = smul.u32 4, %s14
      %p163 = scmp.lt.s32.totalorder %s162, 15
      %s164 = scalar_select %p163, %s162, 15
      %s165 = smul.addr %s164, 4
      %s166 = scalar_lea.vmem %s0, %s165
      %s167 = smul.u32 4, %s14
      %s168 = smul.u32 4, %s14
      %p169 = scmp.lt.s32.totalorder %s168, 15
      %s170 = scalar_select %p169, %s168, 15
      %s171 = smul.addr %s170, 8
      %s172 = scalar_lea.vmem %s3, %s171
      %s173 = smul.u32 4, %s14
      %v175 = vld [vmem:[%s166] sm:$0xf]
      %v176 = vld [vmem:[%s166 + $0x4] sm:$0xf]
      %v177 = vld [vmem:[%s166 + $0x8] sm:$0xf]
      %v178 = vld [vmem:[%s166 + $0xc] sm:$0xf]
      %v179 = vld [vmem:[%s1] sm:$0xf]
      %v180 = vld [vmem:[%s1 + $0x4] sm:$0xf]
      %v181 = vld [vmem:[%s1 + $0x8] sm:$0xf]
      %v182 = vld [vmem:[%s1 + $0xc] sm:$0xf]
      %v183 = vld [vmem:[%s2] sm:$0x1]
      %v185 = vlaneseq
      %v186 = vshrl.u32 %v185, 7
      %v187 = vsub.s32 0, %v186
      %v188 = vrot.slane %v183, %v187
      %v194 = vunpack.c.l.b16 %v175
      %v195 = vunpack.c.l.b16 %v176
      %v196 = vunpack.c.l.b16 %v177
      %v197 = vunpack.c.l.b16 %v178
      %v198 = vpack.c.b16 %v195, %v194
      %v199 = vpack.c.b16 %v197, %v196
      %v204 = vunpack.c.l.b16 %v179
      %v205 = vunpack.c.l.b16 %v180
      %v206 = vunpack.c.l.b16 %v181
      %v207 = vunpack.c.l.b16 %v182
      %v208 = vpack.c.b16 %v205, %v204
      %v209 = vpack.c.b16 %v207, %v206
      %vm212 = vcmask 261120
      %v214 = vsel %vm212, %v198, 0
      %v217 = vsel %vm212, %v199, 0
      %219 = vmatprep.subr.bf16.mxu0 0
      %220 = vmatpush1.bf16.msra.mxu0 0
      %221 = vmatprep.subr.bf16.mxu0 0
      %222 = vmatpush1.bf16.msra.mxu0 0
      %223 = vmatprep.subr.bf16.mxu0 0
      %224 = vmatpush1.bf16.msra.mxu0 0
      %225 = vmatprep.subr.bf16.mxu0 0
      %226 = vmatpush1.bf16.msra.mxu0 0
      %227 = vmatprep.subr.bf16.mxu0 0
      %228 = vmatpush1.bf16.msra.mxu0 0
      %229 = vmatprep.subr.bf16.mxu0 0
      %230 = vmatpush1.bf16.msra.mxu0 0
      %231 = vmatprep.subr.bf16.mxu0 0
      %232 = vmatpush1.bf16.msra.mxu0 %v209
      %233 = vmatprep.subr.bf16.mxu0 0
      %234 = vmatpush1.bf16.msra.mxu0 %v208
      %235 = vmatprep.subr.bf16.mxu0 0
      %236 = vmatpush2.bf16.msra.mxu0 0
      %237 = vmatprep.subr.bf16.mxu0 0
      %238 = vmatpush2.bf16.msra.mxu0 0
      %239 = vmatprep.subr.bf16.mxu0 0
      %240 = vmatpush2.bf16.msra.mxu0 0
      %241 = vmatprep.subr.bf16.mxu0 0
      %242 = vmatpush2.bf16.msra.mxu0 0
      %243 = vmatprep.subr.bf16.mxu0 0
      %244 = vmatpush2.bf16.msra.mxu0 0
      %245 = vmatprep.subr.bf16.mxu0 0
      %246 = vmatpush2.bf16.msra.mxu0 0
      %247 = vmatprep.subr.bf16.mxu0 0
      %248 = vmatpush2.bf16.msra.mxu0 0
      %249 = vmatprep.subr.bf16.mxu0 0
      %250 = vmatpush2.bf16.msra.mxu0 0
      %251 = vmatprep.mubr.bf16.mxu0 0
      %252 = vmatmul.mubr.bf16.gmra.mxu0 %v214
      %v253 = vpop.f32.mrf.mxu0
      %v254 = vadd.f32 %v188, %v253
      %v255 = vpop.f32.mrf.mxu0
      %v256 = vpop.f32.mrf.mxu0
      %v257 = vadd.f32 %v188, %v256
      %v258 = vpop.f32.mrf.mxu0
      %259 = vmatprep.mubr.bf16.mxu0 0
      %260 = vmatmul.mubr.bf16.gmra.mxu0 %v217
      %v261 = vpop.f32.mrf.mxu0
      %v262 = vadd.f32 %v188, %v261
      %v263 = vpop.f32.mrf.mxu0
      %v264 = vpop.f32.mrf.mxu0
      %v265 = vadd.f32 %v188, %v264
      %v266 = vpop.f32.mrf.mxu0
      %267 = vdwg.mxu0
      %268 = vst.msk [vmem:[%s172] sm:$0xff] %vm212, %v254
      %269 = vst.msk [vmem:[%s172 + $0x8] sm:$0xff] %vm212, %v257
      %270 = vst.msk [vmem:[%s172 + $0x10] sm:$0xff] %vm212, %v262
      %271 = vst.msk [vmem:[%s172 + $0x18] sm:$0xff] %vm212, %v265
      %s272 = smul.u32 4, %s14
      %p273 = scmp.lt.s32.totalorder %s272, 15
      %s274 = scalar_select %p273, %s272, 15
      %s275 = smul.addr %s274, 8
      %s276 = scalar_lea.vmem %s3, %s275
      // Predicated region
      $region33: #{_fc.1} parent=31 // pred_check
        %p277 = pneg %p100
      $region34: #{_fc.1} parent=31 // pred_check_branch
        %279 = sbr.rel (%p277) target = $region36
      $region35: #{_fc.1} parent=31 // pred_region
        %s280 = smul.u32 4, %s14
      $region36: #{_fc.1} parent=31 // pred_fallthru
        _
    $region32: #{_fc.1} parent=5 // pred_fallthru
      _
    %p281 = scmp.le.s32.totalorder 2, %s9
    // Predicated region
    $region37: #{_fc.1} parent=5 // pred_check
      %p282 = pneg %p281
    $region38: #{_fc.1} parent=5 // pred_check_branch
      %284 = sbr.rel (%p282) target = $region40
    $region39: #{_fc.1} parent=5 // pred_region
      %s285 = ssub.s32 %s9, 2
      // Predicated region
      $region41: #{_fc.1} parent=39 // pred_check
        %p286 = pneg %p106
      $region42: #{_fc.1} parent=39 // pred_check_branch
        %288 = sbr.rel (%p286) target = $region44
      $region43: #{_fc.1} parent=39 // pred_region
        %s289 = smul.u32 4, %s15
        %p290 = scmp.lt.s32.totalorder %s289, 15
        %s291 = scalar_select %p290, %s289, 15
        %s292 = smul.addr %s291, 8
        %s293 = scalar_lea.vmem %s3, %s292
      $region44: #{_fc.1} parent=39 // pred_fallthru
        _
    $region40: #{_fc.1} parent=5 // pred_fallthru
      _
  $region6: #{_fc.1} parent=0 // loop_footer
    %s13 = sadd.s32 1, %s9
  $region7: #{_fc.1} parent=0 // loop_footer_branch
    %8 = sbr.rel target = $region3
  $region8: #{_fc.1} parent=0 // loop_exit
    _

</llo_original>
